<compile_context>
chip_gen: v7x
topology: tpu7x:2x2x1
jax: 0.10.0
libtpu: 0.0.40
codegen_flags: <defaults>
</compile_context>

<pallas_src>
import random

import jax
import jax.numpy as jnp
from jax.experimental import pallas as pl
from jax.experimental.pallas import tpu as pltpu

LANE = 128
SUBLANE = 8
NEG_BIG = -1e30  # bias for padded vocab columns so argmax never picks them


def _round_up(x, m):
    return ((x + m - 1) // m) * m


# ----------------------------- Pallas kernels -----------------------------

def _lstm_stack_step(h_ref, c_ref, x, w_ref, b_ref, n_layers, h_pad):
    """One time step through the stacked LSTM; updates h_ref/c_ref in place.

    x: (B, E_pad) f32.  Returns top-layer h (B, H_pad) f32.
    """
    Hp = h_pad
    for l in range(n_layers):
        h_l = h_ref[l]
        c_l = c_ref[l]
        xh = jnp.concatenate([x, h_l], axis=1).astype(jnp.bfloat16)   # (B, E+H pad)
        gates = jnp.dot(xh, w_ref[l], preferred_element_type=jnp.float32) + b_ref[l]
        i = jax.nn.sigmoid(gates[:, 0 * Hp:1 * Hp])
        f = jax.nn.sigmoid(gates[:, 1 * Hp:2 * Hp])
        g = jnp.tanh(gates[:, 2 * Hp:3 * Hp])
        o = jax.nn.sigmoid(gates[:, 3 * Hp:4 * Hp])
        c_new = f * c_l + i * g
        h_new = o * jnp.tanh(c_new)
        h_ref[l] = h_new
        c_ref[l] = c_new
        x = h_new
    return x


def _make_encoder_kernel(n_layers, h_pad):
    def kernel(x_ref, w_ref, b_ref, h_ref, c_ref):
        t = pl.program_id(0)

        @pl.when(t == 0)
        def _():
            h_ref[...] = jnp.zeros_like(h_ref)
            c_ref[...] = jnp.zeros_like(c_ref)

        x = x_ref[0]                                   # (B, E_pad) f32
        _lstm_stack_step(h_ref, c_ref, x, w_ref, b_ref, n_layers, h_pad)

    return kernel


def _make_decoder_kernel(n_layers, h_pad):
    def kernel(init_oh_ref, next_oh_ref, tf_ref,       # (1,B,Vp) f32 each
               emb_ref,                                # (Vp,Ep) bf16
               w_ref, b_ref,                           # (L,Ep+Hp,4Hp) bf16, (L,B,4Hp) f32
               fcw_ref, fcb_ref,                       # (Hp,Vp) bf16, (B,Vp) f32
               h0_ref, c0_ref,                         # (L,B,Hp) f32
               out_ref,                                # (1,B,Vp) f32
               h_scr, c_scr, inp_scr):                 # VMEM scratch
        s = pl.program_id(0)

        @pl.when(s == 0)
        def _():
            h_scr[...] = h0_ref[...]
            c_scr[...] = c0_ref[...]
            inp_scr[...] = init_oh_ref[0]              # one-hot of trg[0]

        # embedding lookup as one-hot @ table (keeps the "gather" on the MXU)
        x = jnp.dot(inp_scr[...].astype(jnp.bfloat16), emb_ref[...],
                    preferred_element_type=jnp.float32)          # (B, Ep)

        top = _lstm_stack_step(h_scr, c_scr, x, w_ref, b_ref, n_layers, h_pad)

        logits = jnp.dot(top.astype(jnp.bfloat16), fcw_ref[...],
                         preferred_element_type=jnp.float32) + fcb_ref[...]  # (B, Vp)
        out_ref[0] = logits

        # next input: teacher-forced token vs argmax(logits), both as one-hots
        lane = jax.lax.broadcasted_iota(jnp.int32, logits.shape, 1).astype(jnp.float32)
        mx = jnp.max(logits, axis=1, keepdims=True)
        cand = jnp.where(logits >= mx, lane, float(logits.shape[1]))
        first_max = jnp.min(cand, axis=1, keepdims=True)          # first-max index
        top1_oh = (lane == first_max).astype(jnp.float32)
        tf = tf_ref[0]                                            # (B,Vp) of 0.0/1.0
        inp_scr[...] = tf * next_oh_ref[0] + (1.0 - tf) * top1_oh

    return kernel


# ----------------------------- parameter padding ---------------------------

def _pad_lstm_layer(w_ih, w_hh, b, H, h_pad, in_pad):
    """Build the merged, zero-padded weight [[W_ih];[W_hh]] and padded bias."""
    in_dim = w_ih.shape[0]
    W = jnp.zeros((in_pad + h_pad, 4 * h_pad), jnp.float32)
    B = jnp.zeros((1, 4 * h_pad), jnp.float32)
    for k in range(4):                                 # torch gate order [i,f,g,o]
        W = W.at[:in_dim, k * h_pad:k * h_pad + H].set(w_ih[:, k * H:(k + 1) * H])
        W = W.at[in_pad:in_pad + H, k * h_pad:k * h_pad + H].set(w_hh[:, k * H:(k + 1) * H])
        B = B.at[:, k * h_pad:k * h_pad + H].set(b[:, k * H:(k + 1) * H])
    return W, B


# ------------------------------ Model (glue) ------------------------------

class Encoder:
    """Embedding + n_layers stacked LSTM; returns final (hidden, cell) (padded)."""

    def __init__(self, key, input_dim, emb_dim, hidden_dim, n_layers):
        self.input_dim = input_dim
        self.emb_dim = emb_dim
        self.hidden_dim = hidden_dim
        self.n_layers = n_layers
        self.e_pad = _round_up(emb_dim, LANE)
        self.h_pad = _round_up(hidden_dim, LANE)
        # TODO(synk): kernel assumes padded emb dim == padded hidden dim (true for dims <= 128).
        assert self.e_pad == self.h_pad

        ks = jax.random.split(key, 1 + 3 * n_layers)
        emb = 0.1 * jax.random.normal(ks[0], (input_dim, emb_dim), jnp.float32)
        self.emb = jnp.zeros((input_dim, self.e_pad), jnp.float32).at[:, :emb_dim].set(emb)

        Ws, Bs = [], []
        for l in range(n_layers):
            in_dim = emb_dim if l == 0 else hidden_dim
            w_ih = 0.1 * jax.random.normal(ks[1 + 3 * l], (in_dim, 4 * hidden_dim), jnp.float32)
            w_hh = 0.1 * jax.random.normal(ks[2 + 3 * l], (hidden_dim, 4 * hidden_dim), jnp.float32)
            b = 0.1 * jax.random.normal(ks[3 + 3 * l], (1, 4 * hidden_dim), jnp.float32)  # = b_ih + b_hh
            W, Bv = _pad_lstm_layer(w_ih, w_hh, b, hidden_dim, self.h_pad, self.e_pad)
            Ws.append(W)
            Bs.append(Bv)
        self.w = jnp.stack(Ws).astype(jnp.bfloat16)        # (L, Ep+Hp, 4Hp)
        self.b = jnp.stack(Bs)                             # (L, 1, 4Hp) f32

    def __call__(self, src):
        # src: (src_len, batch) int32
        src_len, batch = src.shape
        b_pad = _round_up(max(batch, SUBLANE), SUBLANE)
        L, Hp, Ep = self.n_layers, self.h_pad, self.e_pad

        src_p = jnp.zeros((src_len, b_pad), src.dtype).at[:, :batch].set(src)
        embedded = jnp.take(self.emb, src_p, axis=0)        # (src_len, b_pad, Ep) f32
        b_bcast = jnp.broadcast_to(self.b, (L, b_pad, 4 * Hp))

        grid_spec = pltpu.PrefetchScalarGridSpec(
            num_scalar_prefetch=0,
            grid=(src_len,),
            in_specs=[
                pl.BlockSpec((1, b_pad, Ep), lambda t: (t, 0, 0)),       # x_t (pipelined)
                pl.BlockSpec(self.w.shape, lambda t: (0, 0, 0)),         # weights resident
                pl.BlockSpec((L, b_pad, 4 * Hp), lambda t: (0, 0, 0)),   # bias resident
            ],
            out_specs=(
                pl.BlockSpec((L, b_pad, Hp), lambda t: (0, 0, 0)),       # h resident across grid
                pl.BlockSpec((L, b_pad, Hp), lambda t: (0, 0, 0)),       # c resident across grid
            ),
        )
        h, c = pl.pallas_call(
            _make_encoder_kernel(L, Hp),
            grid_spec=grid_spec,
            out_shape=(jax.ShapeDtypeStruct((L, b_pad, Hp), jnp.float32),
                       jax.ShapeDtypeStruct((L, b_pad, Hp), jnp.float32)),
            compiler_params=pltpu.CompilerParams(dimension_semantics=("arbitrary",)),
        )(embedded, self.w, b_bcast)
        return h, c                                         # padded (L, b_pad, Hp)


class Decoder:
    """Embedding + stacked LSTM + FC; the whole decode loop is one kernel."""

    def __init__(self, key, output_dim, emb_dim, hidden_dim, n_layers):
        self.output_dim = output_dim
        self.emb_dim = emb_dim
        self.hidden_dim = hidden_dim
        self.n_layers = n_layers
        self.e_pad = _round_up(emb_dim, LANE)
        self.h_pad = _round_up(hidden_dim, LANE)
        self.v_pad = _round_up(output_dim, LANE)
        assert self.e_pad == self.h_pad

        ks = jax.random.split(key, 3 + 3 * n_layers)
        emb = 0.1 * jax.random.normal(ks[0], (output_dim, emb_dim), jnp.float32)
        self.emb = (jnp.zeros((self.v_pad, self.e_pad), jnp.float32)
                    .at[:output_dim, :emb_dim].set(emb).astype(jnp.bfloat16))

        Ws, Bs = [], []
        for l in range(n_layers):
            in_dim = emb_dim if l == 0 else hidden_dim
            w_ih = 0.1 * jax.random.normal(ks[1 + 3 * l], (in_dim, 4 * hidden_dim), jnp.float32)
            w_hh = 0.1 * jax.random.normal(ks[2 + 3 * l], (hidden_dim, 4 * hidden_dim), jnp.float32)
            b = 0.1 * jax.random.normal(ks[3 + 3 * l], (1, 4 * hidden_dim), jnp.float32)  # = b_ih + b_hh
            W, Bv = _pad_lstm_layer(w_ih, w_hh, b, hidden_dim, self.h_pad, self.e_pad)
            Ws.append(W)
            Bs.append(Bv)
        self.w = jnp.stack(Ws).astype(jnp.bfloat16)
        self.b = jnp.stack(Bs)

        fc_w = 0.1 * jax.random.normal(ks[-2], (hidden_dim, output_dim), jnp.float32)
        fc_b = 0.1 * jax.random.normal(ks[-1], (1, output_dim), jnp.float32)
        self.fc_w = (jnp.zeros((self.h_pad, self.v_pad), jnp.float32)
                     .at[:hidden_dim, :output_dim].set(fc_w).astype(jnp.bfloat16))
        self.fc_b = (jnp.full((1, self.v_pad), NEG_BIG, jnp.float32)
                     .at[:, :output_dim].set(fc_b))

    def decode_sequence(self, trg_onehot, tf_blocks, hidden, cell):
        """Run decode steps 1..trg_len-1 in a single pallas_call."""
        trg_len, b_pad, Vp = trg_onehot.shape
        L, Hp = self.n_layers, self.h_pad
        n_steps = trg_len - 1
        b_bcast = jnp.broadcast_to(self.b, (L, b_pad, 4 * Hp))
        fcb_bcast = jnp.broadcast_to(self.fc_b, (b_pad, Vp))

        grid_spec = pltpu.PrefetchScalarGridSpec(
            num_scalar_prefetch=0,
            grid=(n_steps,),
            in_specs=[
                pl.BlockSpec((1, b_pad, Vp), lambda s: (0, 0, 0)),        # one-hot(trg[0])
                pl.BlockSpec((1, b_pad, Vp), lambda s: (s + 1, 0, 0)),    # one-hot(trg[s+1])
                pl.BlockSpec((1, b_pad, Vp), lambda s: (s + 1, 0, 0)),    # teacher-force mask
                pl.BlockSpec(self.emb.shape, lambda s: (0, 0)),           # embedding resident
                pl.BlockSpec(self.w.shape, lambda s: (0, 0, 0)),          # LSTM weights resident
                pl.BlockSpec((L, b_pad, 4 * Hp), lambda s: (0, 0, 0)),    # bias resident
                pl.BlockSpec(self.fc_w.shape, lambda s: (0, 0)),          # FC weight resident
                pl.BlockSpec((b_pad, Vp), lambda s: (0, 0)),              # FC bias resident
                pl.BlockSpec((L, b_pad, Hp), lambda s: (0, 0, 0)),        # h0
                pl.BlockSpec((L, b_pad, Hp), lambda s: (0, 0, 0)),        # c0
            ],
            out_specs=pl.BlockSpec((1, b_pad, Vp), lambda s: (s, 0, 0)),
            scratch_shapes=[
                pltpu.VMEM((L, b_pad, Hp), jnp.float32),   # h state
                pltpu.VMEM((L, b_pad, Hp), jnp.float32),   # c state
                pltpu.VMEM((b_pad, Vp), jnp.float32),      # current input (one-hot)
            ],
        )
        logits = pl.pallas_call(
            _make_decoder_kernel(L, Hp),
            grid_spec=grid_spec,
            out_shape=jax.ShapeDtypeStruct((n_steps, b_pad, Vp), jnp.float32),
            compiler_params=pltpu.CompilerParams(dimension_semantics=("arbitrary",)),
        )(trg_onehot, trg_onehot, tf_blocks, self.emb, self.w, b_bcast,
          self.fc_w, fcb_bcast, hidden, cell)
        return logits                                       # (n_steps, b_pad, Vp)


class Seq2Seq:
    def __init__(self, encoder, decoder, device=None):
        self.encoder = encoder
        self.decoder = decoder
        self.device = device
        assert encoder.hidden_dim == decoder.hidden_dim, \
            'Hidden dimensions of encoder and decoder must be equal!'
        assert encoder.n_layers == decoder.n_layers, \
            'Encoder and decoder must have equal number of layers!'

    def forward(self, src, trg, teacher_forcing_ratio):
        trg_len, batch = trg.shape
        V = self.decoder.output_dim
        Vp = self.decoder.v_pad

        hidden, cell = self.encoder(src)                    # padded (L, b_pad, Hp)
        b_pad = hidden.shape[1]

        outputs0 = jnp.zeros((1, batch, V), jnp.float32)    # outputs[0] stays zero
        if trg_len <= 1:
            return outputs0

        trg_p = jnp.zeros((trg_len, b_pad), trg.dtype).at[:, :batch].set(trg)
        trg_oh = jax.nn.one_hot(trg_p, Vp, dtype=jnp.float32)       # (trg_len, b_pad, Vp)

        # Pre-sample teacher-forcing decisions on the host: one random.random()
        # per decode step, exactly like the PyTorch reference loop.
        tf_list = [0] + [1 if random.random() < teacher_forcing_ratio else 0
                         for _ in range(1, trg_len)]
        tf_blocks = jnp.broadcast_to(
            jnp.asarray(tf_list, jnp.float32)[:, None, None], (trg_len, b_pad, Vp))

        logits = self.decoder.decode_sequence(trg_oh, tf_blocks, hidden, cell)
        outputs = jnp.concatenate([outputs0, logits[:, :batch, :V]], axis=0)
        return outputs                                      # (trg_len, batch, V)


# --------------------------------- main -----------------------------------

if __name__ == "__main__":
    random.seed(0)  # deterministic teacher-forcing decisions

    INPUT_VOCAB = 32
    OUTPUT_VOCAB = 32
    EMB_DIM = 16
    HIDDEN_DIM = 32
    N_LAYERS = 2
    SRC_LEN = 8
    TRG_LEN = 8
    BATCH = 2

    key = jax.random.PRNGKey(0)
    k_enc, k_dec, k_src, k_trg = jax.random.split(key, 4)

    encoder = Encoder(k_enc, INPUT_VOCAB, EMB_DIM, HIDDEN_DIM, N_LAYERS)
    decoder = Decoder(k_dec, OUTPUT_VOCAB, EMB_DIM, HIDDEN_DIM, N_LAYERS)
    model = Seq2Seq(encoder, decoder)

    src = jax.random.randint(k_src, (SRC_LEN, BATCH), 0, INPUT_VOCAB, jnp.int32)
    trg = jax.random.randint(k_trg, (TRG_LEN, BATCH), 0, OUTPUT_VOCAB, jnp.int32)

    out = model.forward(src, trg, teacher_forcing_ratio=0.5)
    out = jax.block_until_ready(out)
    assert out.shape == (TRG_LEN, BATCH, OUTPUT_VOCAB)
    assert bool(jnp.all(jnp.isfinite(out)))
    print("KERNEL_OK")
</pallas_src>

<mosaic_0001>
module attributes {stable_mosaic.version = 11 : i64} {
  func.func @kernel(%arg0: i32, %arg1: memref<1x8x128xf32, #tpu.memory_space<vmem>>, %arg2: memref<2x256x512xbf16, #tpu.memory_space<vmem>>, %arg3: memref<2x8x512xf32, #tpu.memory_space<vmem>>, %arg4: memref<2x8x128xf32, #tpu.memory_space<vmem>>, %arg5: memref<2x8x128xf32, #tpu.memory_space<vmem>>) attributes {dimension_semantics = [#tpu.dimension_semantics<arbitrary>], iteration_bounds = array<i64: 8>, scalar_prefetch = 0 : i64, scratch_operands = 0 : i64, tpu.core_type = #tpu.core_type<tc>, window_params = [{transform_indices = @transform_0, window_bounds = array<i64: 1, 8, 128>}, {pipeline_mode = #tpu.pipeline_mode<synchronous>, transform_indices = @transform_1, window_bounds = array<i64: 2, 256, 512>}, {pipeline_mode = #tpu.pipeline_mode<synchronous>, transform_indices = @transform_2, window_bounds = array<i64: 2, 8, 512>}, {pipeline_mode = #tpu.pipeline_mode<synchronous>, transform_indices = @transform_3, window_bounds = array<i64: 2, 8, 128>}, {pipeline_mode = #tpu.pipeline_mode<synchronous>, transform_indices = @transform_4, window_bounds = array<i64: 2, 8, 128>}]} {
    %c0_i32 = arith.constant 0 : i32
    %0 = arith.cmpi eq, %arg0, %c0_i32 : i32
    %1 = arith.extui %0 : i1 to i32
    %c0_i32_0 = arith.constant 0 : i32
    %2 = arith.cmpi ne, %1, %c0_i32_0 : i32
    scf.if %2 {
      %cst_45 = arith.constant 0.000000e+00 : f32
      %91 = vector.broadcast %cst_45 : f32 to vector<2x8x128xf32>
      %c0_46 = arith.constant 0 : index
      %c0_47 = arith.constant 0 : index
      %c0_48 = arith.constant 0 : index
      %92 = vector.load %arg4[%c0_46, %c0_47, %c0_48] : memref<2x8x128xf32, #tpu.memory_space<vmem>>, vector<2x8x128xf32>
      tpu.vector_store %arg4[%c0_46, %c0_47, %c0_48], %91 {strides = array<i32>} : memref<2x8x128xf32, #tpu.memory_space<vmem>>, vector<2x8x128xf32>,
      %cst_49 = arith.constant 0.000000e+00 : f32
      %93 = vector.broadcast %cst_49 : f32 to vector<2x8x128xf32>
      %c0_50 = arith.constant 0 : index
      %c0_51 = arith.constant 0 : index
      %c0_52 = arith.constant 0 : index
      %94 = vector.load %arg5[%c0_50, %c0_51, %c0_52] : memref<2x8x128xf32, #tpu.memory_space<vmem>>, vector<2x8x128xf32>
      tpu.vector_store %arg5[%c0_50, %c0_51, %c0_52], %93 {strides = array<i32>} : memref<2x8x128xf32, #tpu.memory_space<vmem>>, vector<2x8x128xf32>,
    } else {
    }
    %c0 = arith.constant 0 : index
    %c0_1 = arith.constant 0 : index
    %c0_2 = arith.constant 0 : index
    %3 = vector.load %arg1[%c0, %c0_1, %c0_2] : memref<1x8x128xf32, #tpu.memory_space<vmem>>, vector<1x8x128xf32>
    %4 = vector.shape_cast %3 : vector<1x8x128xf32> to vector<8x128xf32>
    %c0_3 = arith.constant 0 : index
    %c0_4 = arith.constant 0 : index
    %c0_5 = arith.constant 0 : index
    %5 = vector.load %arg4[%c0_3, %c0_4, %c0_5] : memref<2x8x128xf32, #tpu.memory_space<vmem>>, vector<1x8x128xf32>
    %6 = vector.shape_cast %5 : vector<1x8x128xf32> to vector<8x128xf32>
    %c0_6 = arith.constant 0 : index
    %c0_7 = arith.constant 0 : index
    %c0_8 = arith.constant 0 : index
    %7 = vector.load %arg5[%c0_6, %c0_7, %c0_8] : memref<2x8x128xf32, #tpu.memory_space<vmem>>, vector<1x8x128xf32>
    %8 = vector.shape_cast %7 : vector<1x8x128xf32> to vector<8x128xf32>
    %9 = tpu.concatenate %4, %6 in 1 : vector<8x128xf32>, vector<8x128xf32> -> vector<8x256xf32>
    %10 = arith.truncf %9 : vector<8x256xf32> to vector<8x256xbf16>
    %c0_9 = arith.constant 0 : index
    %c0_10 = arith.constant 0 : index
    %c0_11 = arith.constant 0 : index
    %11 = vector.load %arg2[%c0_9, %c0_10, %c0_11] : memref<2x256x512xbf16, #tpu.memory_space<vmem>>, vector<1x256x512xbf16>
    %12 = vector.shape_cast %11 : vector<1x256x512xbf16> to vector<256x512xbf16>
    %cst = arith.constant dense<0.000000e+00> : vector<8x512xf32>
    %13 = tpu.matmul %10, %12, %cst {dimension_numbers = #tpu.dot_dimension_numbers<[1], [0], [0], [1], [0, 0, 1, 1], [], []>} : vector<8x256xbf16>, vector<256x512xbf16>, vector<8x512xf32> -> vector<8x512xf32>
    %c0_12 = arith.constant 0 : index
    %c0_13 = arith.constant 0 : index
    %c0_14 = arith.constant 0 : index
    %14 = vector.load %arg3[%c0_12, %c0_13, %c0_14] : memref<2x8x512xf32, #tpu.memory_space<vmem>>, vector<1x8x512xf32>
    %15 = vector.shape_cast %14 : vector<1x8x512xf32> to vector<8x512xf32>
    %16 = arith.addf %13, %15 : vector<8x512xf32>
    %17 = vector.extract_strided_slice %16 {offsets = [0, 0], sizes = [8, 128], strides = [1, 1]} : vector<8x512xf32> to vector<8x128xf32>
    %18 = arith.negf %17 : vector<8x128xf32>
    %19 = math.exp %18 : vector<8x128xf32>
    %cst_15 = arith.constant 1.000000e+00 : f32
    %20 = vector.broadcast %cst_15 : f32 to vector<8x128xf32>
    %21 = arith.addf %20, %19 : vector<8x128xf32>
    %22 = arith.divf %20, %21 : vector<8x128xf32>
    %23 = vector.extract_strided_slice %16 {offsets = [0, 128], sizes = [8, 128], strides = [1, 1]} : vector<8x512xf32> to vector<8x128xf32>
    %24 = arith.negf %23 : vector<8x128xf32>
    %25 = math.exp %24 : vector<8x128xf32>
    %cst_16 = arith.constant 1.000000e+00 : f32
    %26 = vector.broadcast %cst_16 : f32 to vector<8x128xf32>
    %27 = arith.addf %26, %25 : vector<8x128xf32>
    %28 = arith.divf %26, %27 : vector<8x128xf32>
    %29 = vector.extract_strided_slice %16 {offsets = [0, 256], sizes = [8, 128], strides = [1, 1]} : vector<8x512xf32> to vector<8x128xf32>
    %30 = math.tanh %29 : vector<8x128xf32>
    %31 = vector.extract_strided_slice %16 {offsets = [0, 384], sizes = [8, 128], strides = [1, 1]} : vector<8x512xf32> to vector<8x128xf32>
    %32 = arith.negf %31 : vector<8x128xf32>
    %33 = math.exp %32 : vector<8x128xf32>
    %cst_17 = arith.constant 1.000000e+00 : f32
    %34 = vector.broadcast %cst_17 : f32 to vector<8x128xf32>
    %35 = arith.addf %34, %33 : vector<8x128xf32>
    %36 = arith.divf %34, %35 : vector<8x128xf32>
    %37 = arith.mulf %28, %8 : vector<8x128xf32>
    %38 = arith.mulf %22, %30 : vector<8x128xf32>
    %39 = arith.addf %37, %38 : vector<8x128xf32>
    %40 = math.tanh %39 : vector<8x128xf32>
    %41 = arith.mulf %36, %40 : vector<8x128xf32>
    %c0_18 = arith.constant 0 : index
    %c0_19 = arith.constant 0 : index
    %c0_20 = arith.constant 0 : index
    %42 = vector.load %arg4[%c0_18, %c0_19, %c0_20] : memref<2x8x128xf32, #tpu.memory_space<vmem>>, vector<1x8x128xf32>
    %43 = vector.shape_cast %42 : vector<1x8x128xf32> to vector<8x128xf32>
    %44 = vector.shape_cast %41 : vector<8x128xf32> to vector<1x8x128xf32>
    tpu.vector_store %arg4[%c0_18, %c0_19, %c0_20], %44 {strides = array<i32>} : memref<2x8x128xf32, #tpu.memory_space<vmem>>, vector<1x8x128xf32>,
    %c0_21 = arith.constant 0 : index
    %c0_22 = arith.constant 0 : index
    %c0_23 = arith.constant 0 : index
    %45 = vector.load %arg5[%c0_21, %c0_22, %c0_23] : memref<2x8x128xf32, #tpu.memory_space<vmem>>, vector<1x8x128xf32>
    %46 = vector.shape_cast %45 : vector<1x8x128xf32> to vector<8x128xf32>
    %47 = vector.shape_cast %39 : vector<8x128xf32> to vector<1x8x128xf32>
    tpu.vector_store %arg5[%c0_21, %c0_22, %c0_23], %47 {strides = array<i32>} : memref<2x8x128xf32, #tpu.memory_space<vmem>>, vector<1x8x128xf32>,
    %c1 = arith.constant 1 : index
    %c0_24 = arith.constant 0 : index
    %c0_25 = arith.constant 0 : index
    %48 = vector.load %arg4[%c1, %c0_24, %c0_25] : memref<2x8x128xf32, #tpu.memory_space<vmem>>, vector<1x8x128xf32>
    %49 = vector.shape_cast %48 : vector<1x8x128xf32> to vector<8x128xf32>
    %c1_26 = arith.constant 1 : index
    %c0_27 = arith.constant 0 : index
    %c0_28 = arith.constant 0 : index
    %50 = vector.load %arg5[%c1_26, %c0_27, %c0_28] : memref<2x8x128xf32, #tpu.memory_space<vmem>>, vector<1x8x128xf32>
    %51 = vector.shape_cast %50 : vector<1x8x128xf32> to vector<8x128xf32>
    %52 = tpu.concatenate %41, %49 in 1 : vector<8x128xf32>, vector<8x128xf32> -> vector<8x256xf32>
    %53 = arith.truncf %52 : vector<8x256xf32> to vector<8x256xbf16>
    %c1_29 = arith.constant 1 : index
    %c0_30 = arith.constant 0 : index
    %c0_31 = arith.constant 0 : index
    %54 = vector.load %arg2[%c1_29, %c0_30, %c0_31] : memref<2x256x512xbf16, #tpu.memory_space<vmem>>, vector<1x256x512xbf16>
    %55 = vector.shape_cast %54 : vector<1x256x512xbf16> to vector<256x512xbf16>
    %cst_32 = arith.constant dense<0.000000e+00> : vector<8x512xf32>
    %56 = tpu.matmul %53, %55, %cst_32 {dimension_numbers = #tpu.dot_dimension_numbers<[1], [0], [0], [1], [0, 0, 1, 1], [], []>} : vector<8x256xbf16>, vector<256x512xbf16>, vector<8x512xf32> -> vector<8x512xf32>
    %c1_33 = arith.constant 1 : index
    %c0_34 = arith.constant 0 : index
    %c0_35 = arith.constant 0 : index
    %57 = vector.load %arg3[%c1_33, %c0_34, %c0_35] : memref<2x8x512xf32, #tpu.memory_space<vmem>>, vector<1x8x512xf32>
    %58 = vector.shape_cast %57 : vector<1x8x512xf32> to vector<8x512xf32>
    %59 = arith.addf %56, %58 : vector<8x512xf32>
    %60 = vector.extract_strided_slice %59 {offsets = [0, 0], sizes = [8, 128], strides = [1, 1]} : vector<8x512xf32> to vector<8x128xf32>
    %61 = arith.negf %60 : vector<8x128xf32>
    %62 = math.exp %61 : vector<8x128xf32>
    %cst_36 = arith.constant 1.000000e+00 : f32
    %63 = vector.broadcast %cst_36 : f32 to vector<8x128xf32>
    %64 = arith.addf %63, %62 : vector<8x128xf32>
    %65 = arith.divf %63, %64 : vector<8x128xf32>
    %66 = vector.extract_strided_slice %59 {offsets = [0, 128], sizes = [8, 128], strides = [1, 1]} : vector<8x512xf32> to vector<8x128xf32>
    %67 = arith.negf %66 : vector<8x128xf32>
    %68 = math.exp %67 : vector<8x128xf32>
    %cst_37 = arith.constant 1.000000e+00 : f32
    %69 = vector.broadcast %cst_37 : f32 to vector<8x128xf32>
    %70 = arith.addf %69, %68 : vector<8x128xf32>
    %71 = arith.divf %69, %70 : vector<8x128xf32>
    %72 = vector.extract_strided_slice %59 {offsets = [0, 256], sizes = [8, 128], strides = [1, 1]} : vector<8x512xf32> to vector<8x128xf32>
    %73 = math.tanh %72 : vector<8x128xf32>
    %74 = vector.extract_strided_slice %59 {offsets = [0, 384], sizes = [8, 128], strides = [1, 1]} : vector<8x512xf32> to vector<8x128xf32>
    %75 = arith.negf %74 : vector<8x128xf32>
    %76 = math.exp %75 : vector<8x128xf32>
    %cst_38 = arith.constant 1.000000e+00 : f32
    %77 = vector.broadcast %cst_38 : f32 to vector<8x128xf32>
    %78 = arith.addf %77, %76 : vector<8x128xf32>
    %79 = arith.divf %77, %78 : vector<8x128xf32>
    %80 = arith.mulf %71, %51 : vector<8x128xf32>
    %81 = arith.mulf %65, %73 : vector<8x128xf32>
    %82 = arith.addf %80, %81 : vector<8x128xf32>
    %83 = math.tanh %82 : vector<8x128xf32>
    %84 = arith.mulf %79, %83 : vector<8x128xf32>
    %c1_39 = arith.constant 1 : index
    %c0_40 = arith.constant 0 : index
    %c0_41 = arith.constant 0 : index
    %85 = vector.load %arg4[%c1_39, %c0_40, %c0_41] : memref<2x8x128xf32, #tpu.memory_space<vmem>>, vector<1x8x128xf32>
    %86 = vector.shape_cast %85 : vector<1x8x128xf32> to vector<8x128xf32>
    %87 = vector.shape_cast %84 : vector<8x128xf32> to vector<1x8x128xf32>
    tpu.vector_store %arg4[%c1_39, %c0_40, %c0_41], %87 {strides = array<i32>} : memref<2x8x128xf32, #tpu.memory_space<vmem>>, vector<1x8x128xf32>,
    %c1_42 = arith.constant 1 : index
    %c0_43 = arith.constant 0 : index
    %c0_44 = arith.constant 0 : index
    %88 = vector.load %arg5[%c1_42, %c0_43, %c0_44] : memref<2x8x128xf32, #tpu.memory_space<vmem>>, vector<1x8x128xf32>
    %89 = vector.shape_cast %88 : vector<1x8x128xf32> to vector<8x128xf32>
    %90 = vector.shape_cast %82 : vector<8x128xf32> to vector<1x8x128xf32>
    tpu.vector_store %arg5[%c1_42, %c0_43, %c0_44], %90 {strides = array<i32>} : memref<2x8x128xf32, #tpu.memory_space<vmem>>, vector<1x8x128xf32>,
    return
  }
  func.func @transform_0(%arg0: i32) -> (i32, i32, i32) {
    %c0_i32 = arith.constant 0 : i32
    %c0_i32_0 = arith.constant 0 : i32
    %c0_i32_1 = arith.constant 0 : i32
    return %arg0, %c0_i32, %c0_i32_0 : i32, i32, i32
  }
  func.func @transform_1(%arg0: i32) -> (i32, i32, i32) {
    %c0_i32 = arith.constant 0 : i32
    %c0_i32_0 = arith.constant 0 : i32
    %c0_i32_1 = arith.constant 0 : i32
    %c0_i32_2 = arith.constant 0 : i32
    return %c0_i32, %c0_i32_0, %c0_i32_1 : i32, i32, i32
  }
  func.func @transform_2(%arg0: i32) -> (i32, i32, i32) {
    %c0_i32 = arith.constant 0 : i32
    %c0_i32_0 = arith.constant 0 : i32
    %c0_i32_1 = arith.constant 0 : i32
    %c0_i32_2 = arith.constant 0 : i32
    return %c0_i32, %c0_i32_0, %c0_i32_1 : i32, i32, i32
  }
  func.func @transform_3(%arg0: i32) -> (i32, i32, i32) {
    %c0_i32 = arith.constant 0 : i32
    %c0_i32_0 = arith.constant 0 : i32
    %c0_i32_1 = arith.constant 0 : i32
    %c0_i32_2 = arith.constant 0 : i32
    return %c0_i32, %c0_i32_0, %c0_i32_1 : i32, i32, i32
  }
  func.func @transform_4(%arg0: i32) -> (i32, i32, i32) {
    %c0_i32 = arith.constant 0 : i32
    %c0_i32_0 = arith.constant 0 : i32
    %c0_i32_1 = arith.constant 0 : i32
    %c0_i32_2 = arith.constant 0 : i32
    return %c0_i32, %c0_i32_0, %c0_i32_1 : i32, i32, i32
  }
}

</mosaic_0001>

<llo_original>
// kernel: tpu_custom_call.1
$region0: #{tpu_custom_call.1}
  #allocation0 [shape = 'u32[]', space=smem, size = 0x4, offset = 0x4, fixed_abs, tag = 'smem constant byte address 0x4 - core index']
  #allocation1 [shape = 'u32[144,128]{1,0:T(1,128)}', space=vmem, size = 0x12000, scoped, tag = 'internal scratch']
  %s0 = inlined_call_operand.hbm [shape: f32[8,8,128], index: 0, kind: input, shape index: {}]
  %s1 = inlined_call_operand.hbm [shape: bf16[2,256,512], index: 1, kind: input, shape index: {}]
  %s2 = inlined_call_operand.hbm [shape: f32[2,8,512], index: 2, kind: input, shape index: {}]
  %s3 = inlined_call_operand.hbm [shape: f32[2,8,128], index: 3, kind: output, shape index: {0}]
  %s4 = inlined_call_operand.hbm [shape: f32[2,8,128], index: 4, kind: output, shape index: {1}]
  %5 = xla_tuple %s3, %s4
  %s6 = sld [smem:[#allocation0]]
  $region69: #{tpu_custom_call.1} parent=0
    _
  %s8 = ssub.s32 1, %s6
  %s9 = scalar_select 0, %s8, %s6
  $region1: #{tpu_custom_call.1} parent=0
    #allocation2 [shape = 'u8[8192]{0}', space=vmem, size = 0x2000, scoped, tag = 'input window, operand 0']
    #allocation3 [shape = 's32[2]{0}', space=sflag, size = 0x8, scoped, tag = 'scoped memory for tpu_custom_call.1']
    #allocation4 [shape = 's32[2]{0}', space=sflag, size = 0x8, scoped, tag = 'scoped memory for tpu_custom_call.1']
    #allocation5 [shape = 'u8[524288]{0}', space=vmem, size = 0x80000, scoped, tag = 'input window, operand 1, single buffered']
    #allocation6 [shape = 's32[1]{0}', space=sflag, size = 0x4, scoped, tag = 'scoped memory for tpu_custom_call.1']
    #allocation7 [shape = 'u8[32768]{0}', space=vmem, size = 0x8000, scoped, tag = 'input window, operand 2, single buffered']
    #allocation8 [shape = 'u8[8192]{0}', space=vmem, size = 0x2000, scoped, tag = 'output window, operand 0, single buffered']
    #allocation9 [shape = 'u8[8192]{0}', space=vmem, size = 0x2000, scoped, tag = 'output window, operand 1, single buffered']
    #allocation10 [shape = 's32[1]{0}', space=sflag, size = 0x4, scoped, tag = 'scoped memory for tpu_custom_call.1']
    %10 = vsyncpa [#allocation3], 0
    %s11 = scalar_lea.sflag [#allocation3], 1
    %12 = vsyncpa %s11, 0
    %13 = vsyncpa [#allocation6], 0
    %14 = vsyncpa [#allocation4], 0
    %15 = vsyncpa [#allocation10], 0
    loop: start=0, step=1, limit=10
    $region2: #{tpu_custom_call.1} parent=1 // loop_pre_header
      _
    $region3: #{tpu_custom_call.1} parent=1 // loop_header
      %s17 = sphi 0, %s21
      %p18 = scmp.ge.s32.totalorder %s17, 10
      %s27 = sphi 0, %s29
      %s30 = sphi 0, %s27
      %s31 = sphi 0, %s30
      %s47 = sphi 0, %s31
      %s51 = sphi 0, %s51
      %s53 = sphi 0, %s51
      %s54 = sphi 0, %s53
      %s68 = sphi 0, %s54
      %s72 = sphi 0, %s72
      %s74 = sphi 0, %s72
      %s75 = sphi 0, %s74
      %s89 = sphi 0, %s75
      %s93 = sphi 0, %s93
      %s95 = sphi 0, %s93
      %s96 = sphi 0, %s95
      %s110 = sphi 0, %s96
      %s114 = sphi 0, %s114
      %s116 = sphi 0, %s114
      %s117 = sphi 0, %s116
      %s131 = sphi 0, %s117
    $region4: #{tpu_custom_call.1} parent=1 // loop_header_branch
      %20 = sbr.rel (%p18) target = $region8
    $region5: #{tpu_custom_call.1} parent=1 // loop_body
      %s22 = ssub.s32 %s17, 1
      %s23 = ssub.s32 %s17, 2
      %s24 = sadd.s32 %s17, 1
      %s25 = ssub.s32 %s17, %s24
      %p26 = scmp.eq.s32.totalorder %s25, 0
      %s28 = sadd.s32 %s27, 1
      %s29 = scalar_select %p26, %s27, %s28
      %p32 = pneg %p26
      %p33 = scmp.eq.s32.totalorder %s17, 7
      %p34 = por %p32, %p33
      %p35 = scmp.ne.s32.totalorder %s27, %s30
      %p36 = scmp.eq.s32.totalorder %s17, 0
      %p37 = por %p35, %p36
      %p38 = scmp.ne.s32.totalorder %s27, %s30
      %p39 = scmp.eq.s32.totalorder %s22, 7
      %p40 = por %p38, %p39
      %p41 = scmp.ne.s32.totalorder %s30, %s31
      %p42 = scmp.eq.s32.totalorder %s22, 0
      %p43 = por %p41, %p42
      %p44 = scmp.ne.s32.totalorder %s30, %s31
      %p45 = scmp.eq.s32.totalorder %s23, 7
      %p46 = por %p44, %p45
      %p48 = scmp.ne.s32.totalorder %s31, %s47
      %p49 = scmp.eq.s32.totalorder %s23, 0
      %p50 = por %p48, %p49
      %s52 = sadd.s32 %s51, 1
      %p55 = scmp.eq.s32.totalorder %s17, 7
      %p56 = scmp.ne.s32.totalorder %s51, %s53
      %p57 = scmp.eq.s32.totalorder %s17, 0
      %p58 = por %p56, %p57
      %p59 = scmp.ne.s32.totalorder %s51, %s53
      %p60 = scmp.eq.s32.totalorder %s22, 7
      %p61 = por %p59, %p60
      %p62 = scmp.ne.s32.totalorder %s53, %s54
      %p63 = scmp.eq.s32.totalorder %s22, 0
      %p64 = por %p62, %p63
      %p65 = scmp.ne.s32.totalorder %s53, %s54
      %p66 = scmp.eq.s32.totalorder %s23, 7
      %p67 = por %p65, %p66
      %p69 = scmp.ne.s32.totalorder %s54, %s68
      %p70 = scmp.eq.s32.totalorder %s23, 0
      %p71 = por %p69, %p70
      %s73 = sadd.s32 %s72, 1
      %p76 = scmp.eq.s32.totalorder %s17, 7
      %p77 = scmp.ne.s32.totalorder %s72, %s74
      %p78 = scmp.eq.s32.totalorder %s17, 0
      %p79 = por %p77, %p78
      %p80 = scmp.ne.s32.totalorder %s72, %s74
      %p81 = scmp.eq.s32.totalorder %s22, 7
      %p82 = por %p80, %p81
      %p83 = scmp.ne.s32.totalorder %s74, %s75
      %p84 = scmp.eq.s32.totalorder %s22, 0
      %p85 = por %p83, %p84
      %p86 = scmp.ne.s32.totalorder %s74, %s75
      %p87 = scmp.eq.s32.totalorder %s23, 7
      %p88 = por %p86, %p87
      %p90 = scmp.ne.s32.totalorder %s75, %s89
      %p91 = scmp.eq.s32.totalorder %s23, 0
      %p92 = por %p90, %p91
      %s94 = sadd.s32 %s93, 1
      %p97 = scmp.eq.s32.totalorder %s17, 7
      %p98 = scmp.ne.s32.totalorder %s93, %s95
      %p99 = scmp.eq.s32.totalorder %s17, 0
      %p100 = por %p98, %p99
      %p101 = scmp.ne.s32.totalorder %s93, %s95
      %p102 = scmp.eq.s32.totalorder %s22, 7
      %p103 = por %p101, %p102
      %p104 = scmp.ne.s32.totalorder %s95, %s96
      %p105 = scmp.eq.s32.totalorder %s22, 0
      %p106 = por %p104, %p105
      %p107 = scmp.ne.s32.totalorder %s95, %s96
      %p108 = scmp.eq.s32.totalorder %s23, 7
      %p109 = por %p107, %p108
      %p111 = scmp.ne.s32.totalorder %s96, %s110
      %p112 = scmp.eq.s32.totalorder %s23, 0
      %p113 = por %p111, %p112
      %s115 = sadd.s32 %s114, 1
      %p118 = scmp.eq.s32.totalorder %s17, 7
      %p119 = scmp.ne.s32.totalorder %s114, %s116
      %p120 = scmp.eq.s32.totalorder %s17, 0
      %p121 = por %p119, %p120
      %p122 = scmp.ne.s32.totalorder %s114, %s116
      %p123 = scmp.eq.s32.totalorder %s22, 7
      %p124 = por %p122, %p123
      %p125 = scmp.ne.s32.totalorder %s116, %s117
      %p126 = scmp.eq.s32.totalorder %s22, 0
      %p127 = por %p125, %p126
      %p128 = scmp.ne.s32.totalorder %s116, %s117
      %p129 = scmp.eq.s32.totalorder %s23, 7
      %p130 = por %p128, %p129
      %p132 = scmp.ne.s32.totalorder %s117, %s131
      %p133 = scmp.eq.s32.totalorder %s23, 0
      %p134 = por %p132, %p133
      %p135 = scmp.le.s32.totalorder 1, %s17
      %p136 = scmp.lt.s32.totalorder %s17, 9
      %p137 = pnand %p135, %p136
      %p138 = pneg %p137
      // Predicated region
      $region9: #{tpu_custom_call.1} parent=5 // pred_check
        _
      $region10: #{tpu_custom_call.1} parent=5 // pred_check_branch
        %140 = sbr.rel (%p137) target = $region12
      $region11: #{tpu_custom_call.1} parent=5 // pred_region
        %s141 = ssub.s32 %s17, 1
        // Predicated region
        $region13: #{tpu_custom_call.1} parent=11 // pred_check
          %p142 = pneg %p64
        $region14: #{tpu_custom_call.1} parent=11 // pred_check_branch
          %144 = sbr.rel (%p142) target = $region16
        $region15: #{tpu_custom_call.1} parent=11 // pred_region
          %s146 = ssub.s32 16384, 16384
          %147 = vsyncadd [#allocation6], %s146
          %s148 = sshll.u32 [#allocation5], 4
          %s149 = int_to_ptr.vmem [resolvable:$true] %s148
          %154 = dma.hbm_to_vmem [thread:$0]  %s1, 16384, %s149, [#allocation6], 256, 256, 16
        $region16: #{tpu_custom_call.1} parent=11 // pred_fallthru
          _
        // Predicated region
        $region17: #{tpu_custom_call.1} parent=11 // pred_check
          %p155 = pneg %p85
        $region18: #{tpu_custom_call.1} parent=11 // pred_check_branch
          %157 = sbr.rel (%p155) target = $region20
        $region19: #{tpu_custom_call.1} parent=11 // pred_region
          %s159 = ssub.s32 1024, 1024
          %160 = vsyncadd [#allocation6], %s159
          %s161 = sshll.u32 [#allocation7], 4
          %s162 = int_to_ptr.vmem [resolvable:$true] %s161
          %167 = dma.hbm_to_vmem [thread:$0]  %s2, 1024, %s162, [#allocation6], 512, 512, 32
        $region20: #{tpu_custom_call.1} parent=11 // pred_fallthru
          _
      $region12: #{tpu_custom_call.1} parent=5 // pred_fallthru
        _
      %p168 = scmp.lt.s32.totalorder %s17, 8
      // Predicated region
      $region21: #{tpu_custom_call.1} parent=5 // pred_check
        %p169 = pneg %p168
      $region22: #{tpu_custom_call.1} parent=5 // pred_check_branch
        %171 = sbr.rel (%p169) target = $region24
      $region23: #{tpu_custom_call.1} parent=5 // pred_region
        // Predicated region
        $region25: #{tpu_custom_call.1} parent=23 // pred_check
          %p172 = pneg %p37
        $region26: #{tpu_custom_call.1} parent=23 // pred_check_branch
          %174 = sbr.rel (%p172) target = $region28
        $region27: #{tpu_custom_call.1} parent=23 // pred_region
          %s175 = sand.u32 %s27, 1
          %s176 = scalar_lea.sflag [#allocation3], %s175
          %s177 = sand.u32 %s27, 1
          %s178 = smul.addr %s177, 8
          %s179 = scalar_lea.vmem [#allocation2], %s178
          %s181 = ssub.s32 128, 128
          %182 = vsyncadd %s176, %s181
          %s183 = smul.addr %s17, 128
          %s184 = scalar_lea.hbm %s0, %s183
          %s186 = sshll.u32 %s179, 4
          %s187 = int_to_ptr.vmem [resolvable:$true] %s186
          %189 = dma.hbm_to_vmem [thread:$0]  %s184, 128, %s187, %s176
        $region28: #{tpu_custom_call.1} parent=23 // pred_fallthru
          _
      $region24: #{tpu_custom_call.1} parent=5 // pred_fallthru
        _
      %p190 = scmp.le.s32.totalorder 1, %s17
      %p191 = scmp.lt.s32.totalorder %s17, 9
      %p192 = pnand %p190, %p191
      %p193 = pneg %p192
      // Predicated region
      $region29: #{tpu_custom_call.1} parent=5 // pred_check
        _
      $region30: #{tpu_custom_call.1} parent=5 // pred_check_branch
        %195 = sbr.rel (%p192) target = $region32
      $region31: #{tpu_custom_call.1} parent=5 // pred_region
        %s196 = ssub.s32 %s17, 1
        %s197 = sand.u32 %s30, 1
        %s198 = scalar_lea.sflag [#allocation3], %s197
        %s199 = sand.u32 %s30, 1
        %s200 = smul.addr %s199, 8
        %s201 = scalar_lea.vmem [#allocation2], %s200
        // Predicated region
        $region33: #{tpu_custom_call.1} parent=31 // pred_check
          %p202 = pneg %p43
        $region34: #{tpu_custom_call.1} parent=31 // pred_check_branch
          %204 = sbr.rel (%p202) target = $region36
        $region35: #{tpu_custom_call.1} parent=31 // pred_region
          %205 = dma.done %s198, 128
        $region36: #{tpu_custom_call.1} parent=31 // pred_fallthru
          _
        // Predicated region
        $region37: #{tpu_custom_call.1} parent=31 // pred_check
          %p206 = pneg %p64
        $region38: #{tpu_custom_call.1} parent=31 // pred_check_branch
          %208 = sbr.rel (%p206) target = $region40
        $region39: #{tpu_custom_call.1} parent=31 // pred_region
          %209 = dma.done [#allocation6], 16384
        $region40: #{tpu_custom_call.1} parent=31 // pred_fallthru
          _
        // Predicated region
        $region41: #{tpu_custom_call.1} parent=31 // pred_check
          %p210 = pneg %p85
        $region42: #{tpu_custom_call.1} parent=31 // pred_check_branch
          %212 = sbr.rel (%p210) target = $region44
        $region43: #{tpu_custom_call.1} parent=31 // pred_region
          %213 = dma.done [#allocation6], 1024
        $region44: #{tpu_custom_call.1} parent=31 // pred_fallthru
          _
        %s214 = sand.u32 %s30, 1
        %s215 = scalar_lea.sflag [#allocation3], %s214
        %s216 = sand.u32 %s30, 1
        %s217 = smul.addr %s216, 8
        %s218 = scalar_lea.vmem [#allocation2], %s217
        %p219 = pneg %p43
        %p220 = pneg %p40
        %p221 = pneg %p64
        %p222 = pneg %p61
        %p223 = pneg %p85
        %p224 = pneg %p82
        %p225 = pneg %p106
        %p226 = pneg %p103
        %p227 = pneg %p127
        %p228 = pneg %p124
        %p229 = scmp.eq.s32.totalorder %s22, 0
        // Predicated region
        $region45: #{tpu_custom_call.1} parent=31 // pred_check
          %p230 = pneg %p229
        $region46: #{tpu_custom_call.1} parent=31 // pred_check_branch
          %232 = sbr.rel (%p230) target = $region48
        $region47: #{tpu_custom_call.1} parent=31 // pred_region
          %233 = vst [vmem:[#allocation8] sm:$0xff] 0.0
          %234 = vst [vmem:[#allocation8 + $0x8] sm:$0xff] 0.0
          %235 = vst [vmem:[#allocation9] sm:$0xff] 0.0
          %236 = vst [vmem:[#allocation9 + $0x8] sm:$0xff] 0.0
        $region48: #{tpu_custom_call.1} parent=31 // pred_fallthru
          _
        %v237 = vld [vmem:[%s201] sm:$0xff]
        %v238 = vld [vmem:[#allocation8] sm:$0xff]
        %v239 = vld [vmem:[#allocation9] sm:$0xff]
        %v240 = vpack.c.bf16 %v237, %v237
        %v241 = vpack.c.bf16 %v238, %v238
        %v242 = vld [vmem:[#allocation5] sm:$0xff]
        %v243 = vld [vmem:[#allocation5 + $0x8] sm:$0xff]
        %v244 = vld [vmem:[#allocation5 + $0x10] sm:$0xff]
        %v245 = vld [vmem:[#allocation5 + $0x18] sm:$0xff]
        %v246 = vld [vmem:[#allocation5 + $0x20] sm:$0xff]
        %v247 = vld [vmem:[#allocation5 + $0x28] sm:$0xff]
        %v248 = vld [vmem:[#allocation5 + $0x30] sm:$0xff]
        %v249 = vld [vmem:[#allocation5 + $0x38] sm:$0xff]
        %v250 = vld [vmem:[#allocation5 + $0x40] sm:$0xff]
        %v251 = vld [vmem:[#allocation5 + $0x48] sm:$0xff]
        %v252 = vld [vmem:[#allocation5 + $0x50] sm:$0xff]
        %v253 = vld [vmem:[#allocation5 + $0x58] sm:$0xff]
        %v254 = vld [vmem:[#allocation5 + $0x60] sm:$0xff]
        %v255 = vld [vmem:[#allocation5 + $0x68] sm:$0xff]
        %v256 = vld [vmem:[#allocation5 + $0x70] sm:$0xff]
        %v257 = vld [vmem:[#allocation5 + $0x78] sm:$0xff]
        %v258 = vld [vmem:[#allocation5 + $0x80] sm:$0xff]
        %v259 = vld [vmem:[#allocation5 + $0x88] sm:$0xff]
        %v260 = vld [vmem:[#allocation5 + $0x90] sm:$0xff]
        %v261 = vld [vmem:[#allocation5 + $0x98] sm:$0xff]
        %v262 = vld [vmem:[#allocation5 + $0xa0] sm:$0xff]
        %v263 = vld [vmem:[#allocation5 + $0xa8] sm:$0xff]
        %v264 = vld [vmem:[#allocation5 + $0xb0] sm:$0xff]
        %v265 = vld [vmem:[#allocation5 + $0xb8] sm:$0xff]
        %v266 = vld [vmem:[#allocation5 + $0xc0] sm:$0xff]
        %v267 = vld [vmem:[#allocation5 + $0xc8] sm:$0xff]
        %v268 = vld [vmem:[#allocation5 + $0xd0] sm:$0xff]
        %v269 = vld [vmem:[#allocation5 + $0xd8] sm:$0xff]
        %v270 = vld [vmem:[#allocation5 + $0xe0] sm:$0xff]
        %v271 = vld [vmem:[#allocation5 + $0xe8] sm:$0xff]
        %v272 = vld [vmem:[#allocation5 + $0xf0] sm:$0xff]
        %v273 = vld [vmem:[#allocation5 + $0xf8] sm:$0xff]
        %v274 = vld [vmem:[#allocation5 + $0x100] sm:$0xff]
        %v275 = vld [vmem:[#allocation5 + $0x108] sm:$0xff]
        %v276 = vld [vmem:[#allocation5 + $0x110] sm:$0xff]
        %v277 = vld [vmem:[#allocation5 + $0x118] sm:$0xff]
        %v278 = vld [vmem:[#allocation5 + $0x120] sm:$0xff]
        %v279 = vld [vmem:[#allocation5 + $0x128] sm:$0xff]
        %v280 = vld [vmem:[#allocation5 + $0x130] sm:$0xff]
        %v281 = vld [vmem:[#allocation5 + $0x138] sm:$0xff]
        %v282 = vld [vmem:[#allocation5 + $0x140] sm:$0xff]
        %v283 = vld [vmem:[#allocation5 + $0x148] sm:$0xff]
        %v284 = vld [vmem:[#allocation5 + $0x150] sm:$0xff]
        %v285 = vld [vmem:[#allocation5 + $0x158] sm:$0xff]
        %v286 = vld [vmem:[#allocation5 + $0x160] sm:$0xff]
        %v287 = vld [vmem:[#allocation5 + $0x168] sm:$0xff]
        %v288 = vld [vmem:[#allocation5 + $0x170] sm:$0xff]
        %v289 = vld [vmem:[#allocation5 + $0x178] sm:$0xff]
        %v290 = vld [vmem:[#allocation5 + $0x180] sm:$0xff]
        %v291 = vld [vmem:[#allocation5 + $0x188] sm:$0xff]
        %v292 = vld [vmem:[#allocation5 + $0x190] sm:$0xff]
        %v293 = vld [vmem:[#allocation5 + $0x198] sm:$0xff]
        %v294 = vld [vmem:[#allocation5 + $0x1a0] sm:$0xff]
        %v295 = vld [vmem:[#allocation5 + $0x1a8] sm:$0xff]
        %v296 = vld [vmem:[#allocation5 + $0x1b0] sm:$0xff]
        %v297 = vld [vmem:[#allocation5 + $0x1b8] sm:$0xff]
        %v298 = vld [vmem:[#allocation5 + $0x1c0] sm:$0xff]
        %v299 = vld [vmem:[#allocation5 + $0x1c8] sm:$0xff]
        %v300 = vld [vmem:[#allocation5 + $0x1d0] sm:$0xff]
        %v301 = vld [vmem:[#allocation5 + $0x1d8] sm:$0xff]
        %v302 = vld [vmem:[#allocation5 + $0x1e0] sm:$0xff]
        %v303 = vld [vmem:[#allocation5 + $0x1e8] sm:$0xff]
        %v304 = vld [vmem:[#allocation5 + $0x1f0] sm:$0xff]
        %v305 = vld [vmem:[#allocation5 + $0x1f8] sm:$0xff]
        %v306 = vld [vmem:[#allocation7] sm:$0xff]
        %v307 = vld [vmem:[#allocation7 + $0x8] sm:$0xff]
        %v308 = vld [vmem:[#allocation7 + $0x10] sm:$0xff]
        %v309 = vld [vmem:[#allocation7 + $0x18] sm:$0xff]
        %v374 = vunpack.c.l.b16 %v242
        %v375 = vunpack.c.h.b16 %v242
        %v376 = vunpack.c.l.b16 %v243
        %v377 = vunpack.c.h.b16 %v243
        %v378 = vunpack.c.l.b16 %v244
        %v379 = vunpack.c.h.b16 %v244
        %v380 = vunpack.c.l.b16 %v245
        %v381 = vunpack.c.h.b16 %v245
        %v382 = vunpack.c.l.b16 %v246
        %v383 = vunpack.c.h.b16 %v246
        %v384 = vunpack.c.l.b16 %v247
        %v385 = vunpack.c.h.b16 %v247
        %v386 = vunpack.c.l.b16 %v248
        %v387 = vunpack.c.h.b16 %v248
        %v388 = vunpack.c.l.b16 %v249
        %v389 = vunpack.c.h.b16 %v249
        %v390 = vunpack.c.l.b16 %v250
        %v391 = vunpack.c.h.b16 %v250
        %v392 = vunpack.c.l.b16 %v251
        %v393 = vunpack.c.h.b16 %v251
        %v394 = vunpack.c.l.b16 %v252
        %v395 = vunpack.c.h.b16 %v252
        %v396 = vunpack.c.l.b16 %v253
        %v397 = vunpack.c.h.b16 %v253
        %v398 = vunpack.c.l.b16 %v254
        %v399 = vunpack.c.h.b16 %v254
        %v400 = vunpack.c.l.b16 %v255
        %v401 = vunpack.c.h.b16 %v255
        %v402 = vunpack.c.l.b16 %v256
        %v403 = vunpack.c.h.b16 %v256
        %v404 = vunpack.c.l.b16 %v257
        %v405 = vunpack.c.h.b16 %v257
        %v406 = vunpack.c.l.b16 %v258
        %v407 = vunpack.c.h.b16 %v258
        %v408 = vunpack.c.l.b16 %v259
        %v409 = vunpack.c.h.b16 %v259
        %v410 = vunpack.c.l.b16 %v260
        %v411 = vunpack.c.h.b16 %v260
        %v412 = vunpack.c.l.b16 %v261
        %v413 = vunpack.c.h.b16 %v261
        %v414 = vunpack.c.l.b16 %v262
        %v415 = vunpack.c.h.b16 %v262
        %v416 = vunpack.c.l.b16 %v263
        %v417 = vunpack.c.h.b16 %v263
        %v418 = vunpack.c.l.b16 %v264
        %v419 = vunpack.c.h.b16 %v264
        %v420 = vunpack.c.l.b16 %v265
        %v421 = vunpack.c.h.b16 %v265
        %v422 = vunpack.c.l.b16 %v266
        %v423 = vunpack.c.h.b16 %v266
        %v424 = vunpack.c.l.b16 %v267
        %v425 = vunpack.c.h.b16 %v267
        %v426 = vunpack.c.l.b16 %v268
        %v427 = vunpack.c.h.b16 %v268
        %v428 = vunpack.c.l.b16 %v269
        %v429 = vunpack.c.h.b16 %v269
        %v430 = vunpack.c.l.b16 %v270
        %v431 = vunpack.c.h.b16 %v270
        %v432 = vunpack.c.l.b16 %v271
        %v433 = vunpack.c.h.b16 %v271
        %v434 = vunpack.c.l.b16 %v272
        %v435 = vunpack.c.h.b16 %v272
        %v436 = vunpack.c.l.b16 %v273
        %v437 = vunpack.c.h.b16 %v273
        %v438 = vunpack.c.l.b16 %v274
        %v439 = vunpack.c.h.b16 %v274
        %v440 = vunpack.c.l.b16 %v275
        %v441 = vunpack.c.h.b16 %v275
        %v442 = vunpack.c.l.b16 %v276
        %v443 = vunpack.c.h.b16 %v276
        %v444 = vunpack.c.l.b16 %v277
        %v445 = vunpack.c.h.b16 %v277
        %v446 = vunpack.c.l.b16 %v278
        %v447 = vunpack.c.h.b16 %v278
        %v448 = vunpack.c.l.b16 %v279
        %v449 = vunpack.c.h.b16 %v279
        %v450 = vunpack.c.l.b16 %v280
        %v451 = vunpack.c.h.b16 %v280
        %v452 = vunpack.c.l.b16 %v281
        %v453 = vunpack.c.h.b16 %v281
        %v454 = vunpack.c.l.b16 %v282
        %v455 = vunpack.c.h.b16 %v282
        %v456 = vunpack.c.l.b16 %v283
        %v457 = vunpack.c.h.b16 %v283
        %v458 = vunpack.c.l.b16 %v284
        %v459 = vunpack.c.h.b16 %v284
        %v460 = vunpack.c.l.b16 %v285
        %v461 = vunpack.c.h.b16 %v285
        %v462 = vunpack.c.l.b16 %v286
        %v463 = vunpack.c.h.b16 %v286
        %v464 = vunpack.c.l.b16 %v287
        %v465 = vunpack.c.h.b16 %v287
        %v466 = vunpack.c.l.b16 %v288
        %v467 = vunpack.c.h.b16 %v288
        %v468 = vunpack.c.l.b16 %v289
        %v469 = vunpack.c.h.b16 %v289
        %v470 = vunpack.c.l.b16 %v290
        %v471 = vunpack.c.h.b16 %v290
        %v472 = vunpack.c.l.b16 %v291
        %v473 = vunpack.c.h.b16 %v291
        %v474 = vunpack.c.l.b16 %v292
        %v475 = vunpack.c.h.b16 %v292
        %v476 = vunpack.c.l.b16 %v293
        %v477 = vunpack.c.h.b16 %v293
        %v478 = vunpack.c.l.b16 %v294
        %v479 = vunpack.c.h.b16 %v294
        %v480 = vunpack.c.l.b16 %v295
        %v481 = vunpack.c.h.b16 %v295
        %v482 = vunpack.c.l.b16 %v296
        %v483 = vunpack.c.h.b16 %v296
        %v484 = vunpack.c.l.b16 %v297
        %v485 = vunpack.c.h.b16 %v297
        %v486 = vunpack.c.l.b16 %v298
        %v487 = vunpack.c.h.b16 %v298
        %v488 = vunpack.c.l.b16 %v299
        %v489 = vunpack.c.h.b16 %v299
        %v490 = vunpack.c.l.b16 %v300
        %v491 = vunpack.c.h.b16 %v300
        %v492 = vunpack.c.l.b16 %v301
        %v493 = vunpack.c.h.b16 %v301
        %v494 = vunpack.c.l.b16 %v302
        %v495 = vunpack.c.h.b16 %v302
        %v496 = vunpack.c.l.b16 %v303
        %v497 = vunpack.c.h.b16 %v303
        %v498 = vunpack.c.l.b16 %v304
        %v499 = vunpack.c.h.b16 %v304
        %v500 = vunpack.c.l.b16 %v305
        %v501 = vunpack.c.h.b16 %v305
        %v502 = vpack.c.b16 %v378, %v374
        %v503 = vpack.c.b16 %v379, %v375
        %v504 = vpack.c.b16 %v380, %v376
        %v505 = vpack.c.b16 %v381, %v377
        %v506 = vpack.c.b16 %v386, %v382
        %v507 = vpack.c.b16 %v387, %v383
        %v508 = vpack.c.b16 %v388, %v384
        %v509 = vpack.c.b16 %v389, %v385
        %v510 = vpack.c.b16 %v394, %v390
        %v511 = vpack.c.b16 %v395, %v391
        %v512 = vpack.c.b16 %v396, %v392
        %v513 = vpack.c.b16 %v397, %v393
        %v514 = vpack.c.b16 %v402, %v398
        %v515 = vpack.c.b16 %v403, %v399
        %v516 = vpack.c.b16 %v404, %v400
        %v517 = vpack.c.b16 %v405, %v401
        %v518 = vpack.c.b16 %v410, %v406
        %v519 = vpack.c.b16 %v411, %v407
        %v520 = vpack.c.b16 %v412, %v408
        %v521 = vpack.c.b16 %v413, %v409
        %v522 = vpack.c.b16 %v418, %v414
        %v523 = vpack.c.b16 %v419, %v415
        %v524 = vpack.c.b16 %v420, %v416
        %v525 = vpack.c.b16 %v421, %v417
        %v526 = vpack.c.b16 %v426, %v422
        %v527 = vpack.c.b16 %v427, %v423
        %v528 = vpack.c.b16 %v428, %v424
        %v529 = vpack.c.b16 %v429, %v425
        %v530 = vpack.c.b16 %v434, %v430
        %v531 = vpack.c.b16 %v435, %v431
        %v532 = vpack.c.b16 %v436, %v432
        %v533 = vpack.c.b16 %v437, %v433
        %v534 = vpack.c.b16 %v442, %v438
        %v535 = vpack.c.b16 %v443, %v439
        %v536 = vpack.c.b16 %v444, %v440
        %v537 = vpack.c.b16 %v445, %v441
        %v538 = vpack.c.b16 %v450, %v446
        %v539 = vpack.c.b16 %v451, %v447
        %v540 = vpack.c.b16 %v452, %v448
        %v541 = vpack.c.b16 %v453, %v449
        %v542 = vpack.c.b16 %v458, %v454
        %v543 = vpack.c.b16 %v459, %v455
        %v544 = vpack.c.b16 %v460, %v456
        %v545 = vpack.c.b16 %v461, %v457
        %v546 = vpack.c.b16 %v466, %v462
        %v547 = vpack.c.b16 %v467, %v463
        %v548 = vpack.c.b16 %v468, %v464
        %v549 = vpack.c.b16 %v469, %v465
        %v550 = vpack.c.b16 %v474, %v470
        %v551 = vpack.c.b16 %v475, %v471
        %v552 = vpack.c.b16 %v476, %v472
        %v553 = vpack.c.b16 %v477, %v473
        %v554 = vpack.c.b16 %v482, %v478
        %v555 = vpack.c.b16 %v483, %v479
        %v556 = vpack.c.b16 %v484, %v480
        %v557 = vpack.c.b16 %v485, %v481
        %v558 = vpack.c.b16 %v490, %v486
        %v559 = vpack.c.b16 %v491, %v487
        %v560 = vpack.c.b16 %v492, %v488
        %v561 = vpack.c.b16 %v493, %v489
        %v562 = vpack.c.b16 %v498, %v494
        %v563 = vpack.c.b16 %v499, %v495
        %v564 = vpack.c.b16 %v500, %v496
        %v565 = vpack.c.b16 %v501, %v497
        %630 = vmatprep.subr.bf16.mxu0 %v503
        %631 = vmatpush1.bf16.msra.mxu0 %v502
        %632 = vmatprep.subr.bf16.mxu0 %v507
        %633 = vmatpush1.bf16.msra.mxu0 %v506
        %634 = vmatprep.subr.bf16.mxu0 %v511
        %635 = vmatpush1.bf16.msra.mxu0 %v510
        %636 = vmatprep.subr.bf16.mxu0 %v515
        %637 = vmatpush1.bf16.msra.mxu0 %v514
        %638 = vmatprep.subr.bf16.mxu0 %v519
        %639 = vmatpush1.bf16.msra.mxu0 %v518
        %640 = vmatprep.subr.bf16.mxu0 %v523
        %641 = vmatpush1.bf16.msra.mxu0 %v522
        %642 = vmatprep.subr.bf16.mxu0 %v527
        %643 = vmatpush1.bf16.msra.mxu0 %v526
        %644 = vmatprep.subr.bf16.mxu0 %v531
        %645 = vmatpush1.bf16.msra.mxu0 %v530
        %646 = vmatprep.subr.bf16.mxu0 %v535
        %647 = vmatpush1.bf16.msra.mxu0 %v534
        %648 = vmatprep.subr.bf16.mxu0 %v539
        %649 = vmatpush1.bf16.msra.mxu0 %v538
        %650 = vmatprep.subr.bf16.mxu0 %v543
        %651 = vmatpush1.bf16.msra.mxu0 %v542
        %652 = vmatprep.subr.bf16.mxu0 %v547
        %653 = vmatpush1.bf16.msra.mxu0 %v546
        %654 = vmatprep.subr.bf16.mxu0 %v551
        %655 = vmatpush1.bf16.msra.mxu0 %v550
        %656 = vmatprep.subr.bf16.mxu0 %v555
        %657 = vmatpush1.bf16.msra.mxu0 %v554
        %658 = vmatprep.subr.bf16.mxu0 %v559
        %659 = vmatpush1.bf16.msra.mxu0 %v558
        %660 = vmatprep.subr.bf16.mxu0 %v563
        %661 = vmatpush1.bf16.msra.mxu0 %v562
        %662 = vmatprep.mubr.bf16.mxu0 %v241
        %663 = vmatmul.mubr.bf16.gmra.mrb[0].mxu0 %v240
        %v664 = vpop.f32.mrb[0].mxu0
        %v665 = vadd.f32 %v306, %v664
        %v666 = vpop.f32.mrb[0].mxu0
        %v667 = vadd.f32 %v307, %v666
        %v668 = vpop.f32.mrb[0].mxu0
        %v669 = vpop.f32.mrb[0].mxu0
        %670 = vdwg.mxu0
        %671 = vmatprep.subr.bf16.mxu0 %v505
        %672 = vmatpush1.bf16.msra.mxu0 %v504
        %673 = vmatprep.subr.bf16.mxu0 %v509
        %674 = vmatpush1.bf16.msra.mxu0 %v508
        %675 = vmatprep.subr.bf16.mxu0 %v513
        %676 = vmatpush1.bf16.msra.mxu0 %v512
        %677 = vmatprep.subr.bf16.mxu0 %v517
        %678 = vmatpush1.bf16.msra.mxu0 %v516
        %679 = vmatprep.subr.bf16.mxu0 %v521
        %680 = vmatpush1.bf16.msra.mxu0 %v520
        %681 = vmatprep.subr.bf16.mxu0 %v525
        %682 = vmatpush1.bf16.msra.mxu0 %v524
        %683 = vmatprep.subr.bf16.mxu0 %v529
        %684 = vmatpush1.bf16.msra.mxu0 %v528
        %685 = vmatprep.subr.bf16.mxu0 %v533
        %686 = vmatpush1.bf16.msra.mxu0 %v532
        %687 = vmatprep.subr.bf16.mxu0 %v537
        %688 = vmatpush1.bf16.msra.mxu0 %v536
        %689 = vmatprep.subr.bf16.mxu0 %v541
        %690 = vmatpush1.bf16.msra.mxu0 %v540
        %691 = vmatprep.subr.bf16.mxu0 %v545
        %692 = vmatpush1.bf16.msra.mxu0 %v544
        %693 = vmatprep.subr.bf16.mxu0 %v549
        %694 = vmatpush1.bf16.msra.mxu0 %v548
        %695 = vmatprep.subr.bf16.mxu0 %v553
        %696 = vmatpush1.bf16.msra.mxu0 %v552
        %697 = vmatprep.subr.bf16.mxu0 %v557
        %698 = vmatpush1.bf16.msra.mxu0 %v556
        %699 = vmatprep.subr.bf16.mxu0 %v561
        %700 = vmatpush1.bf16.msra.mxu0 %v560
        %701 = vmatprep.subr.bf16.mxu0 %v565
        %702 = vmatpush1.bf16.msra.mxu0 %v564
        %703 = vmatprep.mubr.bf16.mxu0 %v241
        %704 = vmatmul.mubr.bf16.gmra.mrb[0].mxu0 %v240
        %v705 = vpop.f32.mrb[0].mxu0
        %v706 = vadd.f32 %v308, %v705
        %v707 = vpop.f32.mrb[0].mxu0
        %v708 = vadd.f32 %v309, %v707
        %v709 = vpop.f32.mrb[0].mxu0
        %v710 = vpop.f32.mrb[0].mxu0
        %711 = vdwg.mxu0
        %v712 = vxor.u32 %v665, 2147483648
        %v713 = vmul.f32 %v712, 1.442695
        %v714 = vpow.pop %v713
        %v715 = vadd.f32 %v714, 1.0
        %v716 = vrcp.pop %v715
        %v717 = vmul.f32 1.0, %v716
        %v718 = vxor.u32 %v667, 2147483648
        %v719 = vmul.f32 %v718, 1.442695
        %v720 = vpow.pop %v719
        %v721 = vadd.f32 %v720, 1.0
        %v722 = vrcp.pop %v721
        %v723 = vmul.f32 1.0, %v722
        %v724 = vtanh.pop %v706
        %v725 = vxor.u32 %v708, 2147483648
        %v726 = vmul.f32 %v725, 1.442695
        %v727 = vpow.pop %v726
        %v728 = vadd.f32 %v727, 1.0
        %v729 = vrcp.pop %v728
        %v730 = vmul.f32 1.0, %v729
        %v731 = vmul.f32 %v723, %v239
        %v732 = vmul.f32 %v717, %v724
        %v733 = vadd.f32 %v731, %v732
        %v734 = vtanh.pop %v733
        %v735 = vmul.f32 %v730, %v734
        %736 = vst [vmem:[#allocation8] sm:$0xff] %v735
        %737 = vst [vmem:[#allocation9] sm:$0xff] %v733
        %s738 = scalar_lea.vmem [#allocation8], 8
        %v739 = vld [vmem:[%s738] sm:$0xff]
        %s740 = scalar_lea.vmem [#allocation9], 8
        %v741 = vld [vmem:[%s740] sm:$0xff]
        %v742 = vpack.c.bf16 %v735, %v735
        %v743 = vpack.c.bf16 %v739, %v739
        %s744 = scalar_lea.vmem [#allocation5], 512
        %v745 = vld [vmem:[%s744] sm:$0xff]
        %v746 = vld [vmem:[%s744 + $0x8] sm:$0xff]
        %v747 = vld [vmem:[%s744 + $0x10] sm:$0xff]
        %v748 = vld [vmem:[%s744 + $0x18] sm:$0xff]
        %v749 = vld [vmem:[%s744 + $0x20] sm:$0xff]
        %v750 = vld [vmem:[%s744 + $0x28] sm:$0xff]
        %v751 = vld [vmem:[%s744 + $0x30] sm:$0xff]
        %v752 = vld [vmem:[%s744 + $0x38] sm:$0xff]
        %v753 = vld [vmem:[%s744 + $0x40] sm:$0xff]
        %v754 = vld [vmem:[%s744 + $0x48] sm:$0xff]
        %v755 = vld [vmem:[%s744 + $0x50] sm:$0xff]
        %v756 = vld [vmem:[%s744 + $0x58] sm:$0xff]
        %v757 = vld [vmem:[%s744 + $0x60] sm:$0xff]
        %v758 = vld [vmem:[%s744 + $0x68] sm:$0xff]
        %v759 = vld [vmem:[%s744 + $0x70] sm:$0xff]
        %v760 = vld [vmem:[%s744 + $0x78] sm:$0xff]
        %v761 = vld [vmem:[%s744 + $0x80] sm:$0xff]
        %v762 = vld [vmem:[%s744 + $0x88] sm:$0xff]
        %v763 = vld [vmem:[%s744 + $0x90] sm:$0xff]
        %v764 = vld [vmem:[%s744 + $0x98] sm:$0xff]
        %v765 = vld [vmem:[%s744 + $0xa0] sm:$0xff]
        %v766 = vld [vmem:[%s744 + $0xa8] sm:$0xff]
        %v767 = vld [vmem:[%s744 + $0xb0] sm:$0xff]
        %v768 = vld [vmem:[%s744 + $0xb8] sm:$0xff]
        %v769 = vld [vmem:[%s744 + $0xc0] sm:$0xff]
        %v770 = vld [vmem:[%s744 + $0xc8] sm:$0xff]
        %v771 = vld [vmem:[%s744 + $0xd0] sm:$0xff]
        %v772 = vld [vmem:[%s744 + $0xd8] sm:$0xff]
        %v773 = vld [vmem:[%s744 + $0xe0] sm:$0xff]
        %v774 = vld [vmem:[%s744 + $0xe8] sm:$0xff]
        %v775 = vld [vmem:[%s744 + $0xf0] sm:$0xff]
        %v776 = vld [vmem:[%s744 + $0xf8] sm:$0xff]
        %v777 = vld [vmem:[%s744 + $0x100] sm:$0xff]
        %v778 = vld [vmem:[%s744 + $0x108] sm:$0xff]
        %v779 = vld [vmem:[%s744 + $0x110] sm:$0xff]
        %v780 = vld [vmem:[%s744 + $0x118] sm:$0xff]
        %v781 = vld [vmem:[%s744 + $0x120] sm:$0xff]
        %v782 = vld [vmem:[%s744 + $0x128] sm:$0xff]
        %v783 = vld [vmem:[%s744 + $0x130] sm:$0xff]
        %v784 = vld [vmem:[%s744 + $0x138] sm:$0xff]
        %v785 = vld [vmem:[%s744 + $0x140] sm:$0xff]
        %v786 = vld [vmem:[%s744 + $0x148] sm:$0xff]
        %v787 = vld [vmem:[%s744 + $0x150] sm:$0xff]
        %v788 = vld [vmem:[%s744 + $0x158] sm:$0xff]
        %v789 = vld [vmem:[%s744 + $0x160] sm:$0xff]
        %v790 = vld [vmem:[%s744 + $0x168] sm:$0xff]
        %v791 = vld [vmem:[%s744 + $0x170] sm:$0xff]
        %v792 = vld [vmem:[%s744 + $0x178] sm:$0xff]
        %v793 = vld [vmem:[%s744 + $0x180] sm:$0xff]
        %v794 = vld [vmem:[%s744 + $0x188] sm:$0xff]
        %v795 = vld [vmem:[%s744 + $0x190] sm:$0xff]
        %v796 = vld [vmem:[%s744 + $0x198] sm:$0xff]
        %v797 = vld [vmem:[%s744 + $0x1a0] sm:$0xff]
        %v798 = vld [vmem:[%s744 + $0x1a8] sm:$0xff]
        %v799 = vld [vmem:[%s744 + $0x1b0] sm:$0xff]
        %v800 = vld [vmem:[%s744 + $0x1b8] sm:$0xff]
        %v801 = vld [vmem:[%s744 + $0x1c0] sm:$0xff]
        %v802 = vld [vmem:[%s744 + $0x1c8] sm:$0xff]
        %v803 = vld [vmem:[%s744 + $0x1d0] sm:$0xff]
        %v804 = vld [vmem:[%s744 + $0x1d8] sm:$0xff]
        %v805 = vld [vmem:[%s744 + $0x1e0] sm:$0xff]
        %v806 = vld [vmem:[%s744 + $0x1e8] sm:$0xff]
        %v807 = vld [vmem:[%s744 + $0x1f0] sm:$0xff]
        %v808 = vld [vmem:[%s744 + $0x1f8] sm:$0xff]
        %s809 = scalar_lea.vmem [#allocation7], 32
        %v810 = vld [vmem:[%s809] sm:$0xff]
        %v811 = vld [vmem:[%s809 + $0x8] sm:$0xff]
        %v812 = vld [vmem:[%s809 + $0x10] sm:$0xff]
        %v813 = vld [vmem:[%s809 + $0x18] sm:$0xff]
        %v878 = vunpack.c.l.b16 %v745
        %v879 = vunpack.c.h.b16 %v745
        %v880 = vunpack.c.l.b16 %v746
        %v881 = vunpack.c.h.b16 %v746
        %v882 = vunpack.c.l.b16 %v747
        %v883 = vunpack.c.h.b16 %v747
        %v884 = vunpack.c.l.b16 %v748
        %v885 = vunpack.c.h.b16 %v748
        %v886 = vunpack.c.l.b16 %v749
        %v887 = vunpack.c.h.b16 %v749
        %v888 = vunpack.c.l.b16 %v750
        %v889 = vunpack.c.h.b16 %v750
        %v890 = vunpack.c.l.b16 %v751
        %v891 = vunpack.c.h.b16 %v751
        %v892 = vunpack.c.l.b16 %v752
        %v893 = vunpack.c.h.b16 %v752
        %v894 = vunpack.c.l.b16 %v753
        %v895 = vunpack.c.h.b16 %v753
        %v896 = vunpack.c.l.b16 %v754
        %v897 = vunpack.c.h.b16 %v754
        %v898 = vunpack.c.l.b16 %v755
        %v899 = vunpack.c.h.b16 %v755
        %v900 = vunpack.c.l.b16 %v756
        %v901 = vunpack.c.h.b16 %v756
        %v902 = vunpack.c.l.b16 %v757
        %v903 = vunpack.c.h.b16 %v757
        %v904 = vunpack.c.l.b16 %v758
        %v905 = vunpack.c.h.b16 %v758
        %v906 = vunpack.c.l.b16 %v759
        %v907 = vunpack.c.h.b16 %v759
        %v908 = vunpack.c.l.b16 %v760
        %v909 = vunpack.c.h.b16 %v760
        %v910 = vunpack.c.l.b16 %v761
        %v911 = vunpack.c.h.b16 %v761
        %v912 = vunpack.c.l.b16 %v762
        %v913 = vunpack.c.h.b16 %v762
        %v914 = vunpack.c.l.b16 %v763
        %v915 = vunpack.c.h.b16 %v763
        %v916 = vunpack.c.l.b16 %v764
        %v917 = vunpack.c.h.b16 %v764
        %v918 = vunpack.c.l.b16 %v765
        %v919 = vunpack.c.h.b16 %v765
        %v920 = vunpack.c.l.b16 %v766
        %v921 = vunpack.c.h.b16 %v766
        %v922 = vunpack.c.l.b16 %v767
        %v923 = vunpack.c.h.b16 %v767
        %v924 = vunpack.c.l.b16 %v768
        %v925 = vunpack.c.h.b16 %v768
        %v926 = vunpack.c.l.b16 %v769
        %v927 = vunpack.c.h.b16 %v769
        %v928 = vunpack.c.l.b16 %v770
        %v929 = vunpack.c.h.b16 %v770
        %v930 = vunpack.c.l.b16 %v771
        %v931 = vunpack.c.h.b16 %v771
        %v932 = vunpack.c.l.b16 %v772
        %v933 = vunpack.c.h.b16 %v772
        %v934 = vunpack.c.l.b16 %v773
        %v935 = vunpack.c.h.b16 %v773
        %v936 = vunpack.c.l.b16 %v774
        %v937 = vunpack.c.h.b16 %v774
        %v938 = vunpack.c.l.b16 %v775
        %v939 = vunpack.c.h.b16 %v775
        %v940 = vunpack.c.l.b16 %v776
        %v941 = vunpack.c.h.b16 %v776
        %v942 = vunpack.c.l.b16 %v777
        %v943 = vunpack.c.h.b16 %v777
        %v944 = vunpack.c.l.b16 %v778
        %v945 = vunpack.c.h.b16 %v778
        %v946 = vunpack.c.l.b16 %v779
        %v947 = vunpack.c.h.b16 %v779
        %v948 = vunpack.c.l.b16 %v780
        %v949 = vunpack.c.h.b16 %v780
        %v950 = vunpack.c.l.b16 %v781
        %v951 = vunpack.c.h.b16 %v781
        %v952 = vunpack.c.l.b16 %v782
        %v953 = vunpack.c.h.b16 %v782
        %v954 = vunpack.c.l.b16 %v783
        %v955 = vunpack.c.h.b16 %v783
        %v956 = vunpack.c.l.b16 %v784
        %v957 = vunpack.c.h.b16 %v784
        %v958 = vunpack.c.l.b16 %v785
        %v959 = vunpack.c.h.b16 %v785
        %v960 = vunpack.c.l.b16 %v786
        %v961 = vunpack.c.h.b16 %v786
        %v962 = vunpack.c.l.b16 %v787
        %v963 = vunpack.c.h.b16 %v787
        %v964 = vunpack.c.l.b16 %v788
        %v965 = vunpack.c.h.b16 %v788
        %v966 = vunpack.c.l.b16 %v789
        %v967 = vunpack.c.h.b16 %v789
        %v968 = vunpack.c.l.b16 %v790
        %v969 = vunpack.c.h.b16 %v790
        %v970 = vunpack.c.l.b16 %v791
        %v971 = vunpack.c.h.b16 %v791
        %v972 = vunpack.c.l.b16 %v792
        %v973 = vunpack.c.h.b16 %v792
        %v974 = vunpack.c.l.b16 %v793
        %v975 = vunpack.c.h.b16 %v793
        %v976 = vunpack.c.l.b16 %v794
        %v977 = vunpack.c.h.b16 %v794
        %v978 = vunpack.c.l.b16 %v795
        %v979 = vunpack.c.h.b16 %v795
        %v980 = vunpack.c.l.b16 %v796
        %v981 = vunpack.c.h.b16 %v796
        %v982 = vunpack.c.l.b16 %v797
        %v983 = vunpack.c.h.b16 %v797
        %v984 = vunpack.c.l.b16 %v798
        %v985 = vunpack.c.h.b16 %v798
        %v986 = vunpack.c.l.b16 %v799
        %v987 = vunpack.c.h.b16 %v799
        %v988 = vunpack.c.l.b16 %v800
        %v989 = vunpack.c.h.b16 %v800
        %v990 = vunpack.c.l.b16 %v801
        %v991 = vunpack.c.h.b16 %v801
        %v992 = vunpack.c.l.b16 %v802
        %v993 = vunpack.c.h.b16 %v802
        %v994 = vunpack.c.l.b16 %v803
        %v995 = vunpack.c.h.b16 %v803
        %v996 = vunpack.c.l.b16 %v804
        %v997 = vunpack.c.h.b16 %v804
        %v998 = vunpack.c.l.b16 %v805
        %v999 = vunpack.c.h.b16 %v805
        %v1000 = vunpack.c.l.b16 %v806
        %v1001 = vunpack.c.h.b16 %v806
        %v1002 = vunpack.c.l.b16 %v807
        %v1003 = vunpack.c.h.b16 %v807
        %v1004 = vunpack.c.l.b16 %v808
        %v1005 = vunpack.c.h.b16 %v808
        %v1006 = vpack.c.b16 %v882, %v878
        %v1007 = vpack.c.b16 %v883, %v879
        %v1008 = vpack.c.b16 %v884, %v880
        %v1009 = vpack.c.b16 %v885, %v881
        %v1010 = vpack.c.b16 %v890, %v886
        %v1011 = vpack.c.b16 %v891, %v887
        %v1012 = vpack.c.b16 %v892, %v888
        %v1013 = vpack.c.b16 %v893, %v889
        %v1014 = vpack.c.b16 %v898, %v894
        %v1015 = vpack.c.b16 %v899, %v895
        %v1016 = vpack.c.b16 %v900, %v896
        %v1017 = vpack.c.b16 %v901, %v897
        %v1018 = vpack.c.b16 %v906, %v902
        %v1019 = vpack.c.b16 %v907, %v903
        %v1020 = vpack.c.b16 %v908, %v904
        %v1021 = vpack.c.b16 %v909, %v905
        %v1022 = vpack.c.b16 %v914, %v910
        %v1023 = vpack.c.b16 %v915, %v911
        %v1024 = vpack.c.b16 %v916, %v912
        %v1025 = vpack.c.b16 %v917, %v913
        %v1026 = vpack.c.b16 %v922, %v918
        %v1027 = vpack.c.b16 %v923, %v919
        %v1028 = vpack.c.b16 %v924, %v920
        %v1029 = vpack.c.b16 %v925, %v921
        %v1030 = vpack.c.b16 %v930, %v926
        %v1031 = vpack.c.b16 %v931, %v927
        %v1032 = vpack.c.b16 %v932, %v928
        %v1033 = vpack.c.b16 %v933, %v929
        %v1034 = vpack.c.b16 %v938, %v934
        %v1035 = vpack.c.b16 %v939, %v935
        %v1036 = vpack.c.b16 %v940, %v936
        %v1037 = vpack.c.b16 %v941, %v937
        %v1038 = vpack.c.b16 %v946, %v942
        %v1039 = vpack.c.b16 %v947, %v943
        %v1040 = vpack.c.b16 %v948, %v944
        %v1041 = vpack.c.b16 %v949, %v945
        %v1042 = vpack.c.b16 %v954, %v950
        %v1043 = vpack.c.b16 %v955, %v951
        %v1044 = vpack.c.b16 %v956, %v952
        %v1045 = vpack.c.b16 %v957, %v953
        %v1046 = vpack.c.b16 %v962, %v958
        %v1047 = vpack.c.b16 %v963, %v959
        %v1048 = vpack.c.b16 %v964, %v960
        %v1049 = vpack.c.b16 %v965, %v961
        %v1050 = vpack.c.b16 %v970, %v966
        %v1051 = vpack.c.b16 %v971, %v967
        %v1052 = vpack.c.b16 %v972, %v968
        %v1053 = vpack.c.b16 %v973, %v969
        %v1054 = vpack.c.b16 %v978, %v974
        %v1055 = vpack.c.b16 %v979, %v975
        %v1056 = vpack.c.b16 %v980, %v976
        %v1057 = vpack.c.b16 %v981, %v977
        %v1058 = vpack.c.b16 %v986, %v982
        %v1059 = vpack.c.b16 %v987, %v983
        %v1060 = vpack.c.b16 %v988, %v984
        %v1061 = vpack.c.b16 %v989, %v985
        %v1062 = vpack.c.b16 %v994, %v990
        %v1063 = vpack.c.b16 %v995, %v991
        %v1064 = vpack.c.b16 %v996, %v992
        %v1065 = vpack.c.b16 %v997, %v993
        %v1066 = vpack.c.b16 %v1002, %v998
        %v1067 = vpack.c.b16 %v1003, %v999
        %v1068 = vpack.c.b16 %v1004, %v1000
        %v1069 = vpack.c.b16 %v1005, %v1001
        %1134 = vmatprep.subr.bf16.mxu0 %v1007
        %1135 = vmatpush1.bf16.msra.mxu0 %v1006
        %1136 = vmatprep.subr.bf16.mxu0 %v1011
        %1137 = vmatpush1.bf16.msra.mxu0 %v1010
        %1138 = vmatprep.subr.bf16.mxu0 %v1015
        %1139 = vmatpush1.bf16.msra.mxu0 %v1014
        %1140 = vmatprep.subr.bf16.mxu0 %v1019
        %1141 = vmatpush1.bf16.msra.mxu0 %v1018
        %1142 = vmatprep.subr.bf16.mxu0 %v1023
        %1143 = vmatpush1.bf16.msra.mxu0 %v1022
        %1144 = vmatprep.subr.bf16.mxu0 %v1027
        %1145 = vmatpush1.bf16.msra.mxu0 %v1026
        %1146 = vmatprep.subr.bf16.mxu0 %v1031
        %1147 = vmatpush1.bf16.msra.mxu0 %v1030
        %1148 = vmatprep.subr.bf16.mxu0 %v1035
        %1149 = vmatpush1.bf16.msra.mxu0 %v1034
        %1150 = vmatprep.subr.bf16.mxu0 %v1039
        %1151 = vmatpush1.bf16.msra.mxu0 %v1038
        %1152 = vmatprep.subr.bf16.mxu0 %v1043
        %1153 = vmatpush1.bf16.msra.mxu0 %v1042
        %1154 = vmatprep.subr.bf16.mxu0 %v1047
        %1155 = vmatpush1.bf16.msra.mxu0 %v1046
        %1156 = vmatprep.subr.bf16.mxu0 %v1051
        %1157 = vmatpush1.bf16.msra.mxu0 %v1050
        %1158 = vmatprep.subr.bf16.mxu0 %v1055
        %1159 = vmatpush1.bf16.msra.mxu0 %v1054
        %1160 = vmatprep.subr.bf16.mxu0 %v1059
        %1161 = vmatpush1.bf16.msra.mxu0 %v1058
        %1162 = vmatprep.subr.bf16.mxu0 %v1063
        %1163 = vmatpush1.bf16.msra.mxu0 %v1062
        %1164 = vmatprep.subr.bf16.mxu0 %v1067
        %1165 = vmatpush1.bf16.msra.mxu0 %v1066
        %1166 = vmatprep.mubr.bf16.mxu0 %v743
        %1167 = vmatmul.mubr.bf16.gmra.mrb[0].mxu0 %v742
        %v1168 = vpop.f32.mrb[0].mxu0
        %v1169 = vadd.f32 %v810, %v1168
        %v1170 = vpop.f32.mrb[0].mxu0
        %v1171 = vadd.f32 %v811, %v1170
        %v1172 = vpop.f32.mrb[0].mxu0
        %v1173 = vpop.f32.mrb[0].mxu0
        %1174 = vdwg.mxu0
        %1175 = vmatprep.subr.bf16.mxu0 %v1009
        %1176 = vmatpush1.bf16.msra.mxu0 %v1008
        %1177 = vmatprep.subr.bf16.mxu0 %v1013
        %1178 = vmatpush1.bf16.msra.mxu0 %v1012
        %1179 = vmatprep.subr.bf16.mxu0 %v1017
        %1180 = vmatpush1.bf16.msra.mxu0 %v1016
        %1181 = vmatprep.subr.bf16.mxu0 %v1021
        %1182 = vmatpush1.bf16.msra.mxu0 %v1020
        %1183 = vmatprep.subr.bf16.mxu0 %v1025
        %1184 = vmatpush1.bf16.msra.mxu0 %v1024
        %1185 = vmatprep.subr.bf16.mxu0 %v1029
        %1186 = vmatpush1.bf16.msra.mxu0 %v1028
        %1187 = vmatprep.subr.bf16.mxu0 %v1033
        %1188 = vmatpush1.bf16.msra.mxu0 %v1032
        %1189 = vmatprep.subr.bf16.mxu0 %v1037
        %1190 = vmatpush1.bf16.msra.mxu0 %v1036
        %1191 = vmatprep.subr.bf16.mxu0 %v1041
        %1192 = vmatpush1.bf16.msra.mxu0 %v1040
        %1193 = vmatprep.subr.bf16.mxu0 %v1045
        %1194 = vmatpush1.bf16.msra.mxu0 %v1044
        %1195 = vmatprep.subr.bf16.mxu0 %v1049
        %1196 = vmatpush1.bf16.msra.mxu0 %v1048
        %1197 = vmatprep.subr.bf16.mxu0 %v1053
        %1198 = vmatpush1.bf16.msra.mxu0 %v1052
        %1199 = vmatprep.subr.bf16.mxu0 %v1057
        %1200 = vmatpush1.bf16.msra.mxu0 %v1056
        %1201 = vmatprep.subr.bf16.mxu0 %v1061
        %1202 = vmatpush1.bf16.msra.mxu0 %v1060
        %1203 = vmatprep.subr.bf16.mxu0 %v1065
        %1204 = vmatpush1.bf16.msra.mxu0 %v1064
        %1205 = vmatprep.subr.bf16.mxu0 %v1069
        %1206 = vmatpush1.bf16.msra.mxu0 %v1068
        %1207 = vmatprep.mubr.bf16.mxu0 %v743
        %1208 = vmatmul.mubr.bf16.gmra.mrb[0].mxu0 %v742
        %v1209 = vpop.f32.mrb[0].mxu0
        %v1210 = vadd.f32 %v812, %v1209
        %v1211 = vpop.f32.mrb[0].mxu0
        %v1212 = vadd.f32 %v813, %v1211
        %v1213 = vpop.f32.mrb[0].mxu0
        %v1214 = vpop.f32.mrb[0].mxu0
        %1215 = vdwg.mxu0
        %v1216 = vxor.u32 %v1169, 2147483648
        %v1217 = vmul.f32 %v1216, 1.442695
        %v1218 = vpow.pop %v1217
        %v1219 = vadd.f32 %v1218, 1.0
        %v1220 = vrcp.pop %v1219
        %v1221 = vmul.f32 1.0, %v1220
        %v1222 = vxor.u32 %v1171, 2147483648
        %v1223 = vmul.f32 %v1222, 1.442695
        %v1224 = vpow.pop %v1223
        %v1225 = vadd.f32 %v1224, 1.0
        %v1226 = vrcp.pop %v1225
        %v1227 = vmul.f32 1.0, %v1226
        %v1228 = vtanh.pop %v1210
        %v1229 = vxor.u32 %v1212, 2147483648
        %v1230 = vmul.f32 %v1229, 1.442695
        %v1231 = vpow.pop %v1230
        %v1232 = vadd.f32 %v1231, 1.0
        %v1233 = vrcp.pop %v1232
        %v1234 = vmul.f32 1.0, %v1233
        %v1235 = vmul.f32 %v1227, %v741
        %v1236 = vmul.f32 %v1221, %v1228
        %v1237 = vadd.f32 %v1235, %v1236
        %v1238 = vtanh.pop %v1237
        %v1239 = vmul.f32 %v1234, %v1238
        %1240 = vst [vmem:[%s738] sm:$0xff] %v1239
        %1241 = vst [vmem:[%s740] sm:$0xff] %v1237
        // Predicated region
        $region49: #{tpu_custom_call.1} parent=31 // pred_check
          %p1242 = pneg %p103
        $region50: #{tpu_custom_call.1} parent=31 // pred_check_branch
          %1244 = sbr.rel (%p1242) target = $region52
        $region51: #{tpu_custom_call.1} parent=31 // pred_region
          %s1246 = ssub.s32 256, 256
          %1247 = vsyncadd [#allocation4], %s1246
          %s1248 = sshll.u32 [#allocation8], 4
          %s1249 = int_to_ptr.vmem [resolvable:$true] %s1248
          %1254 = dma.vmem_to_hbm [thread:$0]  %s1249, 256, %s3, [#allocation4], 128, 128, 8
        $region52: #{tpu_custom_call.1} parent=31 // pred_fallthru
          _
        // Predicated region
        $region53: #{tpu_custom_call.1} parent=31 // pred_check
          %p1255 = pneg %p124
        $region54: #{tpu_custom_call.1} parent=31 // pred_check_branch
          %1257 = sbr.rel (%p1255) target = $region56
        $region55: #{tpu_custom_call.1} parent=31 // pred_region
          %s1259 = ssub.s32 256, 256
          %1260 = vsyncadd [#allocation10], %s1259
          %s1261 = sshll.u32 [#allocation9], 4
          %s1262 = int_to_ptr.vmem [resolvable:$true] %s1261
          %1267 = dma.vmem_to_hbm [thread:$0]  %s1262, 256, %s4, [#allocation10], 128, 128, 8
        $region56: #{tpu_custom_call.1} parent=31 // pred_fallthru
          _
        // Predicated region
        $region57: #{tpu_custom_call.1} parent=31 // pred_check
          %p1268 = pneg %p103
        $region58: #{tpu_custom_call.1} parent=31 // pred_check_branch
          %1270 = sbr.rel (%p1268) target = $region60
        $region59: #{tpu_custom_call.1} parent=31 // pred_region
          %1271 = dma.done [#allocation4], 256
        $region60: #{tpu_custom_call.1} parent=31 // pred_fallthru
          _
        // Predicated region
        $region61: #{tpu_custom_call.1} parent=31 // pred_check
          %p1272 = pneg %p124
        $region62: #{tpu_custom_call.1} parent=31 // pred_check_branch
          %1274 = sbr.rel (%p1272) target = $region64
        $region63: #{tpu_custom_call.1} parent=31 // pred_region
          %1275 = dma.done [#allocation10], 256
        $region64: #{tpu_custom_call.1} parent=31 // pred_fallthru
          _
      $region32: #{tpu_custom_call.1} parent=5 // pred_fallthru
        _
      %p1276 = scmp.le.s32.totalorder 2, %s17
      // Predicated region
      $region65: #{tpu_custom_call.1} parent=5 // pred_check
        %p1277 = pneg %p1276
      $region66: #{tpu_custom_call.1} parent=5 // pred_check_branch
        %1279 = sbr.rel (%p1277) target = $region68
      $region67: #{tpu_custom_call.1} parent=5 // pred_region
        %s1280 = ssub.s32 %s17, 2
      $region68: #{tpu_custom_call.1} parent=5 // pred_fallthru
        _
    $region6: #{tpu_custom_call.1} parent=1 // loop_footer
      %s21 = sadd.s32 1, %s17
    $region7: #{tpu_custom_call.1} parent=1 // loop_footer_branch
      %16 = sbr.rel target = $region3
    $region8: #{tpu_custom_call.1} parent=1 // loop_exit
      _
    %1281 = vsyncpa [#allocation3], 1
    %s1282 = scalar_lea.sflag [#allocation3], 1
    %1283 = vsyncpa %s1282, 1
    %1284 = vsyncpa [#allocation6], 1
    %1285 = vsyncpa [#allocation4], 1
    %s1286 = scalar_lea.sflag [#allocation4], 1
    %1287 = vsyncpa %s1286, 1
    %1288 = vsyncpa [#allocation10], 1

</llo_original>
